<compile_context>
chip_gen: v6e
topology: v6e:2x2x1
jax: 0.10.0
libtpu: 0.0.40
codegen_flags: <defaults>
</compile_context>

<pallas_src>
import functools

import jax
import jax.numpy as jnp
from jax.experimental import pallas as pl
from jax.experimental.pallas import tpu as pltpu


_LANE_W = 512                     # lane-dense last dim (multiple of 128 lanes)
_MAX_TILE_ROWS = 1024             # 1024 x 512 f32 tile = 2 MiB -> <=12 MiB VMEM w/ double-buffering
_VMEM_LIMIT = 32 * 1024 * 1024    # explicit; safe on v5e (128 MiB), v6e (128 MiB), v7x (64 MiB)
_PALLAS_MIN_ELEMS = 1 << 15       # below this, launch + plumbing dominate -> plain jnp


def _round_up(x, m):
    return ((x + m - 1) // m) * m


def _lane_dense_layout(total):
    """(padded_rows, tile_rows) for a flat buffer laid out as (rows, _LANE_W).
    tile_rows is a multiple of 8 and divides rows, so every block is (8,128)-aligned."""
    rows_needed = max(1, pl.cdiv(total, _LANE_W))
    if rows_needed <= _MAX_TILE_ROWS:
        tile_rows = _round_up(rows_needed, 8)
        rows = tile_rows
    else:
        tile_rows = _MAX_TILE_ROWS
        rows = _round_up(rows_needed, tile_rows)
    return rows, tile_rows


def _to_2d(flat, rows):
    pad = rows * _LANE_W - flat.shape[0]
    return jnp.pad(flat, (0, pad)).reshape(rows, _LANE_W)


# ---------------------------------------------------------------------------
# Kernel 1: identity forward  (ExampleModel.forward(img, ...) -> img)
# ---------------------------------------------------------------------------
def _copy_kernel(x_ref, o_ref):
    o_ref[...] = x_ref[...]


@jax.jit
def _identity_copy(img):
    total = img.size
    rows, tile_rows = _lane_dense_layout(total)
    x2d = _to_2d(img.reshape(-1), rows)
    out = pl.pallas_call(
        _copy_kernel,
        out_shape=jax.ShapeDtypeStruct((rows, _LANE_W), img.dtype),
        grid=(rows // tile_rows,),
        in_specs=[pl.BlockSpec((tile_rows, _LANE_W), lambda i: (i, 0))],
        out_specs=pl.BlockSpec((tile_rows, _LANE_W), lambda i: (i, 0)),
        input_output_aliases={0: 0},              # output aliases input: no extra HBM buffer
        compiler_params=pltpu.CompilerParams(
            dimension_semantics=("parallel",),    # shards the copy grid across TCs on v7x
            vmem_limit_bytes=_VMEM_LIMIT,
        ),
    )(x2d)
    return out.reshape(-1)[:total].reshape(img.shape)


def forward(img):
    # NOTE: `return img` would be the literal zero-cost forward; the aliased,
    # tiled copy kernel is kept to express the forward pass as a Pallas kernel.
    return _identity_copy(img)


# ---------------------------------------------------------------------------
# Kernel 2: momentum blend  (tgt = m*tgt + (1-m)*ol), in-place via aliasing
# ---------------------------------------------------------------------------
@functools.partial(jax.jit, static_argnames=("momentum",))
def momentum_blend_pallas(tgt, ol, momentum):
    total = tgt.size
    rows, tile_rows = _lane_dense_layout(total)
    tgt2 = _to_2d(tgt.reshape(-1), rows)
    ol2 = _to_2d(ol.reshape(-1), rows)

    m = float(momentum)
    one_minus_m = 1.0 - m                         # hoisted; no per-invocation scalar op

    def kernel(tgt_ref, ol_ref, o_ref):
        o_ref[...] = (tgt_ref[...] * m + ol_ref[...] * one_minus_m).astype(o_ref.dtype)

    out = pl.pallas_call(
        kernel,
        out_shape=jax.ShapeDtypeStruct((rows, _LANE_W), tgt.dtype),
        grid=(rows // tile_rows,),
        in_specs=[pl.BlockSpec((tile_rows, _LANE_W), lambda i: (i, 0)),
                  pl.BlockSpec((tile_rows, _LANE_W), lambda i: (i, 0))],
        out_specs=pl.BlockSpec((tile_rows, _LANE_W), lambda i: (i, 0)),
        input_output_aliases={0: 0},              # update the target buffer in place
        compiler_params=pltpu.CompilerParams(
            dimension_semantics=("parallel",),
            vmem_limit_bytes=_VMEM_LIMIT,
        ),
    )(tgt2, ol2)
    return out.reshape(-1)[:total].reshape(tgt.shape)


def _blend(tgt, ol, momentum):
    """Momentum blend: plain jnp for tiny tensors (a kernel launch + padding
    plumbing would cost >10x the math), aliased Pallas kernel for big ones."""
    if tgt.size < _PALLAS_MIN_ELEMS:
        return tgt * momentum + ol * (1.0 - momentum)
    return momentum_blend_pallas(tgt, ol, momentum=momentum)


class ExampleModelJAX:
    """JAX/Pallas port of ExampleModel (tests/test_runtime/test_hooks/test_byol_hook.py)."""

    def __init__(self, key):
        k1, k2, k3, k4 = jax.random.split(key, 4)
        # nn.Conv2d(3, 3, 3): weight (3, 3, 3, 3), bias (3,).  The conv layers
        # are only parameter carriers for the momentum update; they are never
        # applied in forward(), so no convolution kernel is needed.
        self.online_w = jax.random.normal(k1, (3, 3, 3, 3), jnp.float32) * 0.1
        self.online_b = jax.random.normal(k2, (3,), jnp.float32) * 0.1
        self.target_w = jax.random.normal(k3, (3, 3, 3, 3), jnp.float32) * 0.1
        self.target_b = jax.random.normal(k4, (3,), jnp.float32) * 0.1
        self.base_momentum = 0.96
        self.momentum = self.base_momentum

    def forward(self, img, img_metas=None, test_mode=False, **kwargs):
        return forward(img)

    def train_step(self, data_batch, optimizer=None):
        loss = self.forward(**data_batch)
        return dict(loss=loss)

    def momentum_update(self):
        m = self.momentum
        self.target_w = _blend(self.target_w, self.online_w, m)
        self.target_b = _blend(self.target_b, self.online_b, m)


if __name__ == "__main__":
    key = jax.random.PRNGKey(0)
    k_model, k_img, k_big, k_tgt, k_ol = jax.random.split(key, 5)

    model = ExampleModelJAX(k_model)

    # --- forward: identity on img (small NCHW, 3 channels like Conv2d(3,3,3)) ---
    img = jax.random.normal(k_img, (2, 3, 16, 16), jnp.float32)
    img_metas = [{} for _ in range(2)]
    out = jax.block_until_ready(model.forward(img, img_metas))
    assert out.shape == img.shape and out.dtype == img.dtype
    assert jnp.array_equal(out, img), "forward must be identity on img"

    # --- larger image: exercises the multi-tile 'parallel' grid path ---
    img_big = jax.random.normal(k_big, (4, 3, 224, 224), jnp.float32)
    out_big = jax.block_until_ready(forward(img_big))
    assert jnp.array_equal(out_big, img_big)

    # --- momentum update on the tiny conv params (plain-jnp path) ---
    tgt_w_before, tgt_b_before = model.target_w, model.target_b
    model.momentum_update()
    jax.block_until_ready(model.target_w)
    m = model.momentum
    assert jnp.allclose(model.target_w, tgt_w_before * m + model.online_w * (1.0 - m), atol=1e-6)
    assert jnp.allclose(model.target_b, tgt_b_before * m + model.online_b * (1.0 - m), atol=1e-6)

    # --- momentum blend Pallas kernel on a large parameter tensor ---
    tgt_big = jax.random.normal(k_tgt, (600, 1000), jnp.float32)
    ol_big = jax.random.normal(k_ol, (600, 1000), jnp.float32)
    blended = jax.block_until_ready(momentum_blend_pallas(tgt_big, ol_big, momentum=0.96))
    assert jnp.allclose(blended, tgt_big * 0.96 + ol_big * 0.04, atol=1e-6)

    # --- train_step returns dict(loss=img), same as the PyTorch module ---
    result = model.train_step(dict(img=img, img_metas=img_metas))
    jax.block_until_ready(result["loss"])
    assert jnp.array_equal(result["loss"], img)

    print("KERNEL_OK")
</pallas_src>

<mosaic_0001>
module attributes {stable_mosaic.version = 11 : i64} {
  func.func @_copy_kernel(%arg0: i32, %arg1: memref<8x512xf32, #tpu.memory_space<vmem>>, %arg2: memref<8x512xf32, #tpu.memory_space<vmem>>) attributes {dimension_semantics = [#tpu.dimension_semantics<parallel>], iteration_bounds = array<i64: 1>, scalar_prefetch = 0 : i64, scratch_operands = 0 : i64, tpu.core_type = #tpu.core_type<tc>, window_params = [{transform_indices = @transform_0, window_bounds = array<i64: 8, 512>}, {transform_indices = @transform_1, window_bounds = array<i64: 8, 512>}]} {
    %c0 = arith.constant 0 : index
    %c0_0 = arith.constant 0 : index
    %0 = vector.load %arg1[%c0, %c0_0] : memref<8x512xf32, #tpu.memory_space<vmem>>, vector<8x512xf32>
    %c0_1 = arith.constant 0 : index
    %c0_2 = arith.constant 0 : index
    %1 = vector.load %arg2[%c0_1, %c0_2] : memref<8x512xf32, #tpu.memory_space<vmem>>, vector<8x512xf32>
    tpu.vector_store %arg2[%c0_1, %c0_2], %0 {strides = array<i32>} : memref<8x512xf32, #tpu.memory_space<vmem>>, vector<8x512xf32>,
    return
  }
  func.func @transform_0(%arg0: i32) -> (i32, i32) {
    %c0_i32 = arith.constant 0 : i32
    %c0_i32_0 = arith.constant 0 : i32
    return %arg0, %c0_i32 : i32, i32
  }
  func.func @transform_1(%arg0: i32) -> (i32, i32) {
    %c0_i32 = arith.constant 0 : i32
    %c0_i32_0 = arith.constant 0 : i32
    return %arg0, %c0_i32 : i32, i32
  }
}

</mosaic_0001>

<llo_original>
// kernel: _identity_copy.1
$region0: #{_identity_copy.1}
  #allocation0 [shape = 'u32[]', space=smem, size = 0x4, offset = 0x4, fixed_abs, tag = 'smem constant byte address 0x4 - core index']
  #allocation1 [shape = 'u32[144,128]{1,0:T(1,128)}', space=vmem, size = 0x12000, scoped, tag = 'internal scratch']
  %s0 = inlined_call_operand.vmem [shape: f32[8,512], index: 0, kind: input, shape index: {}, may-alias: {0,1}]
  %s1 = inlined_call_operand.vmem [shape: f32[8,512], index: 1, kind: output, shape index: {}, may-alias: {0,1}]
  %s2 = sld [smem:[#allocation0]]
  $region14: #{_identity_copy.1} parent=0
    _
  %s4 = ssub.s32 1, %s2
  %s5 = scalar_select 0, %s4, %s2
  // Predicated region
  $region2: #{_identity_copy.1} parent=0 // pred_check
    _
  $region3: #{_identity_copy.1} parent=0 // pred_check_branch
    %7 = sbr.rel (0) target = $region5
  $region4: #{_identity_copy.1} parent=0 // pred_region
    _
  $region5: #{_identity_copy.1} parent=0 // pred_fallthru
    _
  %v8 = vld [vmem:[%s0] sm:$0xff]
  %v9 = vld [vmem:[%s0 + $0x8] sm:$0xff]
  %v10 = vld [vmem:[%s0 + $0x10] sm:$0xff]
  %v11 = vld [vmem:[%s0 + $0x18] sm:$0xff]
  %12 = vst [vmem:[%s1] sm:$0xff] %v8
  %13 = vst [vmem:[%s1 + $0x8] sm:$0xff] %v9
  %14 = vst [vmem:[%s1 + $0x10] sm:$0xff] %v10
  %15 = vst [vmem:[%s1 + $0x18] sm:$0xff] %v11
  // Predicated region
  $region6: #{_identity_copy.1} parent=0 // pred_check
    _
  $region7: #{_identity_copy.1} parent=0 // pred_check_branch
    %17 = sbr.rel (0) target = $region9
  $region8: #{_identity_copy.1} parent=0 // pred_region
    _
  $region9: #{_identity_copy.1} parent=0 // pred_fallthru
    _
  // Predicated region
  $region10: #{_identity_copy.1} parent=0 // pred_check
    _
  $region11: #{_identity_copy.1} parent=0 // pred_check_branch
    %19 = sbr.rel (0) target = $region13
  $region12: #{_identity_copy.1} parent=0 // pred_region
    _
  $region13: #{_identity_copy.1} parent=0 // pred_fallthru
    _

</llo_original>
